<compile_context>
chip_gen: v7x
topology: tpu7x:2x2x1
jax: 0.10.0
libtpu: 0.0.40
codegen_flags: <defaults>
</compile_context>

<pallas_src>
import functools

import jax
import jax.numpy as jnp
from jax.experimental import pallas as pl
from jax.experimental.pallas import tpu as pltpu


def _rmsnorm_kernel(x_ref, gamma_ref, o_ref, *, eps, inv_scale):
    x = x_ref[...]                                        # (tile_rows, dim), native dtype
    xf = x.astype(jnp.float32)
    # f32 reduction: sum of squares along the lane (feature) axis.
    sq_sum = jnp.sum(xf * xf, axis=-1, keepdims=True)     # (tile_rows, 1)
    # 1 / max(sqrt(sq_sum) * dim**-0.5, eps) == min(rsqrt(sq_sum) * sqrt(dim), 1/eps)
    inv = jnp.minimum(jax.lax.rsqrt(sq_sum) * inv_scale, 1.0 / eps)
    # f32 epilogue for all dtypes; HBM-bound so the VPU has plenty of slack.
    out = (xf * inv) * gamma_ref[...]
    o_ref[...] = out.astype(o_ref.dtype)


def rmsnorm(x, gamma, *, eps=1e-8, row_tile=None, vmem_limit_bytes=None):
    """RMSNorm over the last axis of x, matching retro_pytorch.RMSNorm.

    x: (..., dim)    gamma: (dim,)
    """
    dim = x.shape[-1]
    inv_scale = float(dim) ** 0.5           # 1 / (dim ** -0.5)

    orig_shape = x.shape
    x2d = x.reshape(-1, dim)                # (rows, dim)
    rows = x2d.shape[0]
    gamma2d = gamma.reshape(1, dim).astype(jnp.float32)   # cast once, outside the kernel

    itemsize = x.dtype.itemsize
    sublane = max(8, 32 // itemsize)        # 8 rows (f32), 16 (bf16), 32 (i8)

    if row_tile is None:
        # Size the block from a ~40 MiB VMEM budget: 2x double-buffered in +
        # 2x double-buffered out (native dtype) + ~3 f32-sized temporaries.
        # This yields ~8-12 MiB of x+out HBM traffic per step.
        budget = 40 << 20
        per_row_cost = 4 * dim * itemsize + 12 * dim
        row_tile = (budget // per_row_cost) // sublane * sublane
        row_tile = max(sublane, min(int(row_tile), 8192))

        # Keep >= 8 grid steps when rows allow (>= 2 pipelined steps per v7x
        # TensorCore), but never shrink the x block below ~2 MiB.
        floor_rows = max(sublane, ((2 << 20) // (dim * itemsize)) // sublane * sublane)
        per_step = (rows // 8) // sublane * sublane
        if per_step >= floor_rows:
            row_tile = min(row_tile, per_step)

    row_tile = int(row_tile)
    if rows <= sublane:
        # Block equal to the full (row) extent is always legal, even if it is
        # not a sublane multiple.
        row_tile = rows
    else:
        row_tile = max(sublane, (row_tile // sublane) * sublane)
        row_tile = min(row_tile, (rows // sublane) * sublane)

    # Ragged rows: last block may be partial (masked store); no pad/slice copies.
    grid = (pl.cdiv(rows, row_tile),)

    if vmem_limit_bytes is None:
        blk_native = row_tile * dim * itemsize
        blk_f32 = row_tile * dim * 4
        # 2x double-buffered in + 2x double-buffered out + ~3 f32 temps + gamma + slack.
        vmem_limit_bytes = max(32 << 20, 4 * blk_native + 3 * blk_f32 + dim * 4 + (2 << 20))
    # Stay well below v7x's 64 MiB physical VMEM; also safe on v5e/v6e (128 MiB).
    vmem_limit_bytes = int(min(48 << 20, vmem_limit_bytes))

    out2d = pl.pallas_call(
        functools.partial(_rmsnorm_kernel, eps=eps, inv_scale=inv_scale),
        out_shape=jax.ShapeDtypeStruct((rows, dim), x.dtype),
        grid_spec=pltpu.PrefetchScalarGridSpec(
            num_scalar_prefetch=0,
            grid=grid,
            in_specs=[
                pl.BlockSpec((row_tile, dim), lambda i: (i, 0)),
                pl.BlockSpec((1, dim), lambda i: (0, 0)),
            ],
            out_specs=pl.BlockSpec((row_tile, dim), lambda i: (i, 0)),
        ),
        compiler_params=pltpu.CompilerParams(
            dimension_semantics=("parallel",),
            vmem_limit_bytes=vmem_limit_bytes,
        ),
    )(x2d, gamma2d)

    return out2d.reshape(orig_shape)


def rmsnorm_reference(x, gamma, *, eps=1e-8):
    dim = x.shape[-1]
    scale = float(dim) ** (-0.5)
    xf = x.astype(jnp.float32)
    norm = jnp.linalg.norm(xf, axis=-1, keepdims=True) * scale
    norm = jnp.maximum(norm, eps)
    return (xf / norm * gamma.astype(jnp.float32)).astype(x.dtype)


if __name__ == "__main__":
    key = jax.random.PRNGKey(0)

    # Small shapes consistent with the module (RETRO hidden dims are multiples
    # of 128: enc_dim=896, dec_dim=768); keep the feature axis lane-dense with
    # dim=128 here.
    batch, seq, dim = 2, 8, 128
    # Deterministic parameter init: nn.Parameter(torch.ones(dim))
    gamma = jnp.ones((dim,), dtype=jnp.float32)

    # 1) f32 path, rows exactly fill one block.
    k1, k2 = jax.random.split(key)
    x = jax.random.normal(k1, (batch, seq, dim), dtype=jnp.float32)
    out = rmsnorm(x, gamma, eps=1e-8)
    jax.block_until_ready(out)
    ref = rmsnorm_reference(x, gamma, eps=1e-8)
    assert out.shape == x.shape
    assert jnp.allclose(out, ref, atol=2e-3, rtol=2e-3), "f32 mismatch vs reference"

    # 2) f32 path with a ragged row count (exercises the partial last block).
    x_ragged = jax.random.normal(k2, (batch, seq - 1, dim), dtype=jnp.float32)
    out_r = rmsnorm(x_ragged, gamma, eps=1e-8)
    jax.block_until_ready(out_r)
    ref_r = rmsnorm_reference(x_ragged, gamma, eps=1e-8)
    assert out_r.shape == x_ragged.shape
    assert jnp.allclose(out_r, ref_r, atol=2e-3, rtol=2e-3), "ragged mismatch vs reference"

    # 3) bf16 input (f32 reduction + f32 epilogue, single downcast at the store).
    x_bf16 = x.astype(jnp.bfloat16)
    out_b = rmsnorm(x_bf16, gamma, eps=1e-8)
    jax.block_until_ready(out_b)
    ref_b = rmsnorm_reference(x_bf16, gamma, eps=1e-8)
    assert out_b.shape == x_bf16.shape
    assert jnp.allclose(out_b.astype(jnp.float32), ref_b.astype(jnp.float32),
                        atol=5e-2, rtol=5e-2), "bf16 mismatch vs reference"

    print("KERNEL_OK")
</pallas_src>

<mosaic_0001>
module attributes {stable_mosaic.version = 11 : i64} {
  func.func @_rmsnorm_kernel(%arg0: i32, %arg1: memref<16x128xf32, #tpu.memory_space<vmem>>, %arg2: memref<1x128xf32, #tpu.memory_space<vmem>>, %arg3: memref<16x128xf32, #tpu.memory_space<vmem>>) attributes {dimension_semantics = [#tpu.dimension_semantics<parallel>], iteration_bounds = array<i64: 1>, scalar_prefetch = 0 : i64, scratch_operands = 0 : i64, tpu.core_type = #tpu.core_type<tc>, window_params = [{transform_indices = @transform_0, window_bounds = array<i64: 16, 128>}, {pipeline_mode = #tpu.pipeline_mode<synchronous>, transform_indices = @transform_1, window_bounds = array<i64: 1, 128>}, {transform_indices = @transform_2, window_bounds = array<i64: 16, 128>}]} {
    %c0 = arith.constant 0 : index
    %c0_0 = arith.constant 0 : index
    %0 = vector.load %arg1[%c0, %c0_0] : memref<16x128xf32, #tpu.memory_space<vmem>>, vector<16x128xf32>
    %1 = arith.mulf %0, %0 : vector<16x128xf32>
    %cst = arith.constant dense<0.000000e+00> : vector<16xf32>
    %2 = vector.multi_reduction <add>, %1, %cst [1] : vector<16x128xf32> to vector<16xf32>
    %3 = vector.shape_cast %2 : vector<16xf32> to vector<16x1xf32>
    %4 = math.rsqrt %3 : vector<16x1xf32>
    %cst_1 = arith.constant 11.3137083 : f32
    %5 = vector.broadcast %cst_1 : f32 to vector<16x1xf32>
    %6 = arith.mulf %4, %5 : vector<16x1xf32>
    %cst_2 = arith.constant 1.000000e+08 : f32
    %7 = vector.broadcast %cst_2 : f32 to vector<16x1xf32>
    %8 = arith.minimumf %6, %7 : vector<16x1xf32>
    %9 = vector.broadcast %8 : vector<16x1xf32> to vector<16x128xf32>
    %10 = arith.mulf %0, %9 : vector<16x128xf32>
    %c0_3 = arith.constant 0 : index
    %c0_4 = arith.constant 0 : index
    %11 = vector.load %arg2[%c0_3, %c0_4] : memref<1x128xf32, #tpu.memory_space<vmem>>, vector<1x128xf32>
    %12 = vector.broadcast %11 : vector<1x128xf32> to vector<16x128xf32>
    %13 = arith.mulf %10, %12 : vector<16x128xf32>
    %c0_5 = arith.constant 0 : index
    %c0_6 = arith.constant 0 : index
    %14 = vector.load %arg3[%c0_5, %c0_6] : memref<16x128xf32, #tpu.memory_space<vmem>>, vector<16x128xf32>
    tpu.vector_store %arg3[%c0_5, %c0_6], %13 {strides = array<i32>} : memref<16x128xf32, #tpu.memory_space<vmem>>, vector<16x128xf32>,
    return
  }
  func.func @transform_0(%arg0: i32) -> (i32, i32) {
    %c0_i32 = arith.constant 0 : i32
    %c0_i32_0 = arith.constant 0 : i32
    return %arg0, %c0_i32 : i32, i32
  }
  func.func @transform_1(%arg0: i32) -> (i32, i32) {
    %c0_i32 = arith.constant 0 : i32
    %c0_i32_0 = arith.constant 0 : i32
    %c0_i32_1 = arith.constant 0 : i32
    return %c0_i32, %c0_i32_0 : i32, i32
  }
  func.func @transform_2(%arg0: i32) -> (i32, i32) {
    %c0_i32 = arith.constant 0 : i32
    %c0_i32_0 = arith.constant 0 : i32
    return %arg0, %c0_i32 : i32, i32
  }
}

</mosaic_0001>

<llo_original>
// kernel: tpu_custom_call.1
$region0: #{tpu_custom_call.1}
  #allocation0 [shape = 'u32[]', space=smem, size = 0x4, offset = 0x4, fixed_abs, tag = 'smem constant byte address 0x4 - core index']
  #allocation1 [shape = 'u32[144,128]{1,0:T(1,128)}', space=vmem, size = 0x12000, scoped, tag = 'internal scratch']
  %s0 = inlined_call_operand.hbm [shape: f32[16,128], index: 0, kind: input, shape index: {}]
  %s1 = inlined_call_operand.vmem [shape: f32[1,128], index: 1, kind: input, shape index: {}]
  %s2 = inlined_call_operand.hbm [shape: f32[16,128], index: 2, kind: output, shape index: {}]
  %s3 = sld [smem:[#allocation0]]
  $region22: #{tpu_custom_call.1} parent=0
    _
  %s5 = ssub.s32 1, %s3
  %s6 = scalar_select 0, %s5, %s3
  $region1: #{tpu_custom_call.1} parent=0
    #allocation2 [shape = 'u8[8192]{0}', space=vmem, size = 0x2000, scoped, tag = 'input window, operand 0, single buffered']
    #allocation3 [shape = 's32[1]{0}', space=sflag, size = 0x4, scoped, tag = 'scoped memory for tpu_custom_call.1']
    #allocation4 [shape = 's32[1]{0}', space=sflag, size = 0x4, scoped, tag = 'scoped memory for tpu_custom_call.1']
    #allocation5 [shape = 'u8[8192]{0}', space=vmem, size = 0x2000, scoped, tag = 'output window, operand 0, single buffered']
    %7 = vsyncpa [#allocation3], 0
    %8 = vsyncpa [#allocation4], 0
    // Predicated region
    $region2: #{tpu_custom_call.1} parent=1 // pred_check
      _
    $region3: #{tpu_custom_call.1} parent=1 // pred_check_branch
      %10 = sbr.rel (0) target = $region5
    $region4: #{tpu_custom_call.1} parent=1 // pred_region
      %s12 = ssub.s32 256, 256
      %13 = vsyncadd [#allocation3], %s12
      %s14 = sshll.u32 [#allocation2], 4
      %s15 = int_to_ptr.vmem [resolvable:$true] %s14
      %20 = dma.hbm_to_vmem [thread:$0]  %s0, 256, %s15, [#allocation3], 128, 128, 8
    $region5: #{tpu_custom_call.1} parent=1 // pred_fallthru
      _
    // Predicated region
    $region6: #{tpu_custom_call.1} parent=1 // pred_check
      _
    $region7: #{tpu_custom_call.1} parent=1 // pred_check_branch
      %22 = sbr.rel (0) target = $region9
    $region8: #{tpu_custom_call.1} parent=1 // pred_region
      _
    $region9: #{tpu_custom_call.1} parent=1 // pred_fallthru
      _
    // Predicated region
    $region10: #{tpu_custom_call.1} parent=1 // pred_check
      _
    $region11: #{tpu_custom_call.1} parent=1 // pred_check_branch
      %24 = sbr.rel (0) target = $region13
    $region12: #{tpu_custom_call.1} parent=1 // pred_region
      %25 = dma.done [#allocation3], 256
    $region13: #{tpu_custom_call.1} parent=1 // pred_fallthru
      _
    %v26 = vld [vmem:[#allocation2] sm:$0xff]
    %v27 = vld [vmem:[#allocation2 + $0x8] sm:$0xff]
    %v28 = vmul.f32 %v26, %v26
    %v29 = vmul.f32 %v27, %v27
    %30 = vadd.xlane.f32.xlu0 %v28
    %v31 = vpop.xlane.xlu0 %30
    %32 = vadd.xlane.f32.xlu0 %v29
    %v33 = vpop.xlane.xlu0 %32
    %v34 = vrsqrt.pop %v31
    %v35 = vrsqrt.pop %v33
    %v36 = vmul.f32 %v34, 11.313708
    %v37 = vmul.f32 %v35, 11.313708
    %v38 = vmin.f32 %v36, 1e+08
    %v39 = vmin.f32 %v37, 1e+08
    %v40 = vmul.f32 %v26, %v38
    %v41 = vmul.f32 %v27, %v39
    %v42 = vld [vmem:[%s1] sm:$0x1]
    %v44 = vlaneseq
    %v45 = vshrl.u32 %v44, 7
    %v46 = vsub.s32 0, %v45
    %v47 = vrot.slane %v42, %v46
    %v49 = vmul.f32 %v40, %v47
    %v50 = vmul.f32 %v41, %v47
    %51 = vst [vmem:[#allocation5] sm:$0xff] %v49
    %52 = vst [vmem:[#allocation5 + $0x8] sm:$0xff] %v50
    // Predicated region
    $region14: #{tpu_custom_call.1} parent=1 // pred_check
      _
    $region15: #{tpu_custom_call.1} parent=1 // pred_check_branch
      %54 = sbr.rel (0) target = $region17
    $region16: #{tpu_custom_call.1} parent=1 // pred_region
      %s56 = ssub.s32 256, 256
      %57 = vsyncadd [#allocation4], %s56
      %s58 = sshll.u32 [#allocation5], 4
      %s59 = int_to_ptr.vmem [resolvable:$true] %s58
      %64 = dma.vmem_to_hbm [thread:$0]  %s59, 256, %s2, [#allocation4], 128, 128, 8
    $region17: #{tpu_custom_call.1} parent=1 // pred_fallthru
      _
    // Predicated region
    $region18: #{tpu_custom_call.1} parent=1 // pred_check
      _
    $region19: #{tpu_custom_call.1} parent=1 // pred_check_branch
      %66 = sbr.rel (0) target = $region21
    $region20: #{tpu_custom_call.1} parent=1 // pred_region
      %67 = dma.done [#allocation4], 256
    $region21: #{tpu_custom_call.1} parent=1 // pred_fallthru
      _
    %68 = vsyncpa [#allocation3], 1
    %69 = vsyncpa [#allocation4], 1

</llo_original>
